<compile_context>
chip_gen: v7x
topology: tpu7x:2x2x1
jax: 0.10.0
libtpu: 0.0.40
codegen_flags: <defaults>
</compile_context>

<pallas_src>
import functools
import math

import jax
import jax.numpy as jnp
from jax import lax
from jax.experimental import pallas as pl
from jax.experimental.pallas import tpu as pltpu

_MASK_VALUE = -0.7 * float(jnp.finfo(jnp.float32).max)


def _tile(dim, target, align):
    """Largest tile <= target that divides `dim` and is a multiple of `align`;
    falls back to the full dim (always a legal block size)."""
    if dim <= target:
        return dim
    t = (target // align) * align
    while t >= align:
        if dim % t == 0:
            return t
        t -= align
    return dim


# ----------------------------------------------------------------------------
# Linear (x @ W + b) kernel with K-tiled f32 accumulation.  Operands are bf16
# (MXU-native); bias add and accumulation are f32; output dtype configurable.
# ----------------------------------------------------------------------------
def _linear_kernel(x_ref, w_ref, b_ref, o_ref, acc_ref):
    k = pl.program_id(2)

    @pl.when(k == 0)
    def _init():
        acc_ref[...] = jnp.zeros_like(acc_ref)

    acc_ref[...] += jnp.dot(x_ref[...], w_ref[...],
                            preferred_element_type=jnp.float32)

    @pl.when(k == pl.num_programs(2) - 1)
    def _store():
        o_ref[...] = (acc_ref[...] + b_ref[...]).astype(o_ref.dtype)


def pallas_linear(x2d, w, b, *, out_dtype=jnp.float32,
                  tile_m_target=256, tile_n_target=512, tile_k_target=512):
    """x2d: (M, K) bf16, w: (K, N) bf16, b: (N,) f32 -> (M, N) out_dtype."""
    M, K = x2d.shape
    K2, N = w.shape
    assert K == K2
    b2d = b.reshape(1, N).astype(jnp.float32)

    tm = _tile(M, tile_m_target, 16)    # bf16 sublane packing
    tn = _tile(N, tile_n_target, 128)   # lane-dense output
    tk = _tile(K, tile_k_target, 128)
    grid = (M // tm, N // tn, K // tk)

    return pl.pallas_call(
        _linear_kernel,
        out_shape=jax.ShapeDtypeStruct((M, N), out_dtype),
        grid_spec=pltpu.PrefetchScalarGridSpec(
            num_scalar_prefetch=0,
            grid=grid,
            in_specs=[
                pl.BlockSpec((tm, tk), lambda i, j, k: (i, k)),
                pl.BlockSpec((tk, tn), lambda i, j, k: (k, j)),
                pl.BlockSpec((1, tn), lambda i, j, k: (0, j)),
            ],
            out_specs=pl.BlockSpec((tm, tn), lambda i, j, k: (i, j)),
            scratch_shapes=[pltpu.VMEM((tm, tn), jnp.float32)],
        ),
        compiler_params=pltpu.CompilerParams(
            dimension_semantics=("parallel", "parallel", "arbitrary")),
        cost_estimate=pl.CostEstimate(
            flops=2 * M * N * K,
            transcendentals=0,
            bytes_accessed=2 * (M * K + K * N) + M * N * jnp.dtype(out_dtype).itemsize,
        ),
    )(x2d, w, b2d)


# ----------------------------------------------------------------------------
# Causal flash-attention kernel: grid (batch*head, q_tiles, kv_tiles) with an
# online-softmax accumulator held in f32 VMEM scratch across the kv axis.
# q/k/v are bf16; scores / softmax state are f32.
# ----------------------------------------------------------------------------
def _flash_attn_kernel(q_ref, k_ref, v_ref, o_ref, m_scr, l_scr, acc_scr,
                       *, sm_scale, tq, tk):
    qi = pl.program_id(1)
    ki = pl.program_id(2)

    @pl.when(ki == 0)
    def _init():
        m_scr[...] = jnp.full(m_scr.shape, _MASK_VALUE, dtype=m_scr.dtype)
        l_scr[...] = jnp.zeros(l_scr.shape, dtype=l_scr.dtype)
        acc_scr[...] = jnp.zeros(acc_scr.shape, dtype=acc_scr.dtype)

    q_start = qi * tq
    k_start = ki * tk
    fully_below = k_start + tk - 1 <= q_start          # no masking needed
    needed = k_start <= q_start + tq - 1               # causally visible at all
    diagonal = jnp.logical_and(needed, jnp.logical_not(fully_below))

    def _update(s):
        # s: (tq, tk) f32 scores (already scaled / masked).
        m_prev = m_scr[...]                                   # (tq, 1)
        m_new = jnp.maximum(m_prev, s.max(axis=-1, keepdims=True))
        alpha = jnp.exp(m_prev - m_new)
        p = jnp.exp(s - m_new)                                # (tq, tk)
        l_scr[...] = alpha * l_scr[...] + p.sum(axis=-1, keepdims=True)
        acc_scr[...] = alpha * acc_scr[...] + jnp.dot(
            p.astype(v_ref.dtype), v_ref[0], preferred_element_type=jnp.float32)
        m_scr[...] = m_new

    def _scores():
        q = q_ref[0]  # (tq, D) bf16
        k = k_ref[0]  # (tk, D) bf16
        return jnp.dot(q, k.T, preferred_element_type=jnp.float32) * sm_scale

    @pl.when(fully_below)
    def _compute_unmasked():
        _update(_scores())

    @pl.when(diagonal)
    def _compute_masked():
        s = _scores()
        row = q_start + lax.broadcasted_iota(jnp.int32, (tq, tk), 0)
        col = k_start + lax.broadcasted_iota(jnp.int32, (tq, tk), 1)
        _update(jnp.where(row >= col, s, _MASK_VALUE))

    @pl.when(ki == pl.num_programs(2) - 1)
    def _finalize():
        inv_l = pl.reciprocal(l_scr[...], approx=True)
        o_ref[0] = (acc_scr[...] * inv_l).astype(o_ref.dtype)


def pallas_causal_attention(q, k, v, *, sm_scale, out_dtype=jnp.bfloat16):
    """q, k, v: (batch*heads, T, head_dim) bf16 -> (batch*heads, T, head_dim)."""
    BH, T, D = q.shape
    tq = _tile(T, 256, 16)     # bf16 sublane packing
    tk = _tile(T, 512, 128)    # lane dim of scores / PV contraction
    grid = (BH, T // tq, T // tk)

    def q_index_map(b, qi, ki):
        return (b, qi, 0)

    def kv_index_map(b, qi, ki):
        # Clamp to the last causally-needed kv block so above-diagonal tiles
        # reuse the previous block index and their DMA is elided.
        last_needed = (qi * tq + tq - 1) // tk
        return (b, jnp.minimum(ki, last_needed), 0)

    kernel = functools.partial(_flash_attn_kernel, sm_scale=sm_scale, tq=tq, tk=tk)
    return pl.pallas_call(
        kernel,
        out_shape=jax.ShapeDtypeStruct((BH, T, D), out_dtype),
        grid_spec=pltpu.PrefetchScalarGridSpec(
            num_scalar_prefetch=0,
            grid=grid,
            in_specs=[
                pl.BlockSpec((1, tq, D), q_index_map),
                pl.BlockSpec((1, tk, D), kv_index_map),
                pl.BlockSpec((1, tk, D), kv_index_map),
            ],
            out_specs=pl.BlockSpec((1, tq, D), q_index_map),
            scratch_shapes=[
                pltpu.VMEM((tq, 1), jnp.float32),   # running max
                pltpu.VMEM((tq, 1), jnp.float32),   # running denom
                pltpu.VMEM((tq, D), jnp.float32),   # output accumulator
            ],
        ),
        compiler_params=pltpu.CompilerParams(
            dimension_semantics=("parallel", "parallel", "arbitrary")),
        cost_estimate=pl.CostEstimate(
            flops=2 * BH * T * T * D,          # causal ~halves the 4*T*T*D
            transcendentals=BH * T * T // 2,
            bytes_accessed=2 * (4 * BH * T * D),
        ),
    )(q, k, v)


# ----------------------------------------------------------------------------
# Full forward pass (matches CausalSelfAttention.forward with mask=None).
# ----------------------------------------------------------------------------
def causal_self_attention(x, w_attn, b_attn, w_proj, b_proj, *, n_head,
                          attention_mask=None):
    # TODO(synk): attention_mask branch (and returning the attention-weight
    # matrix) is not implemented; this matches the flash / mask=None path.
    assert attention_mask is None
    B, T, C = x.shape
    assert C % n_head == 0
    D = C // n_head

    x_bf = x.astype(jnp.bfloat16).reshape(B * T, C)
    w_attn_bf = w_attn.astype(jnp.bfloat16)
    w_proj_bf = w_proj.astype(jnp.bfloat16)

    # c_attn: (B*T, 3C) kept in bf16 (feeds bf16 attention matmuls directly).
    qkv = pallas_linear(x_bf, w_attn_bf, b_attn, out_dtype=jnp.bfloat16)
    q, k, v = jnp.split(qkv, 3, axis=-1)

    def split_heads(t):
        return (t.reshape(B, T, n_head, D)
                 .transpose(0, 2, 1, 3)
                 .reshape(B * n_head, T, D))

    yh = pallas_causal_attention(split_heads(q), split_heads(k), split_heads(v),
                                 sm_scale=1.0 / math.sqrt(D),
                                 out_dtype=jnp.bfloat16)        # (B*H, T, D)
    y2d = (yh.reshape(B, n_head, T, D)
              .transpose(0, 2, 1, 3)
              .reshape(B * T, C))

    # TODO(synk): attn_dropout / resid_dropout are identity (inference, p=0).
    out = pallas_linear(y2d, w_proj_bf, b_proj,
                        out_dtype=jnp.float32).reshape(B, T, C)
    return out, None


# ----------------------------------------------------------------------------
# Pure-JAX reference (replicates the PyTorch f32 math) for validation.
# ----------------------------------------------------------------------------
def _reference_forward(x, w_attn, b_attn, w_proj, b_proj, n_head):
    B, T, C = x.shape
    D = C // n_head
    hp = lax.Precision.HIGHEST
    qkv = jnp.dot(x, w_attn, precision=hp) + b_attn
    q, k, v = jnp.split(qkv, 3, axis=-1)

    def to_heads(t):
        return t.reshape(B, T, n_head, D).transpose(0, 2, 1, 3)

    q, k, v = map(to_heads, (q, k, v))
    att = jnp.einsum("bhqd,bhkd->bhqk", q, k, precision=hp) / math.sqrt(D)
    causal = jnp.tril(jnp.ones((T, T), dtype=bool))
    att = jnp.where(causal[None, None], att, -jnp.inf)
    att = jax.nn.softmax(att, axis=-1)
    y = jnp.einsum("bhqk,bhkd->bhqd", att, v, precision=hp)
    y = y.transpose(0, 2, 1, 3).reshape(B, T, C)
    return jnp.dot(y, w_proj, precision=hp) + b_proj


if __name__ == "__main__":
    B, T, C, H = 2, 8, 32, 4
    key = jax.random.PRNGKey(0)
    kx, kw1, kb1, kw2, kb2 = jax.random.split(key, 5)
    x = jax.random.normal(kx, (B, T, C), dtype=jnp.float32)
    w_attn = 0.1 * jax.random.normal(kw1, (C, 3 * C), dtype=jnp.float32)
    b_attn = 0.1 * jax.random.normal(kb1, (3 * C,), dtype=jnp.float32)
    w_proj = 0.1 * jax.random.normal(kw2, (C, C), dtype=jnp.float32)
    b_proj = 0.1 * jax.random.normal(kb2, (C,), dtype=jnp.float32)

    y, attn_w = causal_self_attention(x, w_attn, b_attn, w_proj, b_proj, n_head=H)
    y = jax.block_until_ready(y)

    y_ref = _reference_forward(x, w_attn, b_attn, w_proj, b_proj, H)
    assert y.shape == (B, T, C)
    assert y.dtype == jnp.float32
    assert attn_w is None
    # bf16 matmul operands vs f32 HIGHEST reference -> looser tolerance.
    max_err = float(jnp.max(jnp.abs(y - y_ref)))
    assert jnp.allclose(y, y_ref, atol=3e-2, rtol=3e-2), f"max |err| = {max_err}"

    print("KERNEL_OK")
</pallas_src>

<mosaic_0001>
module attributes {stable_mosaic.version = 11 : i64} {
  func.func @_linear_kernel(%arg0: i32, %arg1: i32, %arg2: i32, %arg3: memref<16x32xbf16, #tpu.memory_space<vmem>>, %arg4: memref<32x96xbf16, #tpu.memory_space<vmem>>, %arg5: memref<1x96xf32, #tpu.memory_space<vmem>>, %arg6: memref<16x96xbf16, #tpu.memory_space<vmem>>, %arg7: memref<16x96xf32, #tpu.memory_space<vmem>>) attributes {dimension_semantics = [#tpu.dimension_semantics<parallel>, #tpu.dimension_semantics<parallel>, #tpu.dimension_semantics<arbitrary>], iteration_bounds = array<i64: 1, 1, 1>, scalar_prefetch = 0 : i64, scratch_operands = 1 : i64, tpu.core_type = #tpu.core_type<tc>, window_params = [{transform_indices = @transform_0, window_bounds = array<i64: 16, 32>}, {transform_indices = @transform_1, window_bounds = array<i64: 32, 96>}, {transform_indices = @transform_2, window_bounds = array<i64: 1, 96>}, {transform_indices = @transform_3, window_bounds = array<i64: 16, 96>}]} {
    %c0_i32 = arith.constant 0 : i32
    %0 = arith.cmpi eq, %arg2, %c0_i32 : i32
    %1 = arith.extui %0 : i1 to i32
    %c0_i32_0 = arith.constant 0 : i32
    %2 = arith.cmpi ne, %1, %c0_i32_0 : i32
    scf.if %2 {
      %cst_10 = arith.constant 0.000000e+00 : f32
      %12 = vector.broadcast %cst_10 : f32 to vector<16x96xf32>
      %c0_11 = arith.constant 0 : index
      %c0_12 = arith.constant 0 : index
      %13 = vector.load %arg7[%c0_11, %c0_12] : memref<16x96xf32, #tpu.memory_space<vmem>>, vector<16x96xf32>
      tpu.vector_store %arg7[%c0_11, %c0_12], %12 {strides = array<i32>} : memref<16x96xf32, #tpu.memory_space<vmem>>, vector<16x96xf32>,
    } else {
    }
    %c0 = arith.constant 0 : index
    %c0_1 = arith.constant 0 : index
    %3 = vector.load %arg7[%c0, %c0_1] : memref<16x96xf32, #tpu.memory_space<vmem>>, vector<16x96xf32>
    %c0_2 = arith.constant 0 : index
    %c0_3 = arith.constant 0 : index
    %4 = vector.load %arg3[%c0_2, %c0_3] : memref<16x32xbf16, #tpu.memory_space<vmem>>, vector<16x32xbf16>
    %c0_4 = arith.constant 0 : index
    %c0_5 = arith.constant 0 : index
    %5 = vector.load %arg4[%c0_4, %c0_5] : memref<32x96xbf16, #tpu.memory_space<vmem>>, vector<32x96xbf16>
    %cst = arith.constant dense<0.000000e+00> : vector<16x96xf32>
    %6 = tpu.matmul %4, %5, %cst {dimension_numbers = #tpu.dot_dimension_numbers<[1], [0], [0], [1], [0, 0, 1, 1], [], []>} : vector<16x32xbf16>, vector<32x96xbf16>, vector<16x96xf32> -> vector<16x96xf32>
    %7 = arith.addf %3, %6 : vector<16x96xf32>
    %c0_6 = arith.constant 0 : index
    %c0_7 = arith.constant 0 : index
    %8 = vector.load %arg7[%c0_6, %c0_7] : memref<16x96xf32, #tpu.memory_space<vmem>>, vector<16x96xf32>
    tpu.vector_store %arg7[%c0_6, %c0_7], %7 {strides = array<i32>} : memref<16x96xf32, #tpu.memory_space<vmem>>, vector<16x96xf32>,
    %c0_i32_8 = arith.constant 0 : i32
    %9 = arith.cmpi eq, %arg2, %c0_i32_8 : i32
    %10 = arith.extui %9 : i1 to i32
    %c0_i32_9 = arith.constant 0 : i32
    %11 = arith.cmpi ne, %10, %c0_i32_9 : i32
    scf.if %11 {
      %c0_10 = arith.constant 0 : index
      %c0_11 = arith.constant 0 : index
      %12 = vector.load %arg7[%c0_10, %c0_11] : memref<16x96xf32, #tpu.memory_space<vmem>>, vector<16x96xf32>
      %c0_12 = arith.constant 0 : index
      %c0_13 = arith.constant 0 : index
      %13 = vector.load %arg5[%c0_12, %c0_13] : memref<1x96xf32, #tpu.memory_space<vmem>>, vector<1x96xf32>
      %14 = vector.broadcast %13 : vector<1x96xf32> to vector<16x96xf32>
      %15 = arith.addf %12, %14 : vector<16x96xf32>
      %16 = arith.truncf %15 : vector<16x96xf32> to vector<16x96xbf16>
      %c0_14 = arith.constant 0 : index
      %c0_15 = arith.constant 0 : index
      %17 = vector.load %arg6[%c0_14, %c0_15] : memref<16x96xbf16, #tpu.memory_space<vmem>>, vector<16x96xbf16>
      tpu.vector_store %arg6[%c0_14, %c0_15], %16 {strides = array<i32>} : memref<16x96xbf16, #tpu.memory_space<vmem>>, vector<16x96xbf16>,
    } else {
    }
    return
  }
  func.func @transform_0(%arg0: i32, %arg1: i32, %arg2: i32) -> (i32, i32) {
    %c0_i32 = arith.constant 0 : i32
    return %arg0, %arg2 : i32, i32
  }
  func.func @transform_1(%arg0: i32, %arg1: i32, %arg2: i32) -> (i32, i32) {
    %c0_i32 = arith.constant 0 : i32
    return %arg2, %arg1 : i32, i32
  }
  func.func @transform_2(%arg0: i32, %arg1: i32, %arg2: i32) -> (i32, i32) {
    %c0_i32 = arith.constant 0 : i32
    %c0_i32_0 = arith.constant 0 : i32
    return %c0_i32, %arg1 : i32, i32
  }
  func.func @transform_3(%arg0: i32, %arg1: i32, %arg2: i32) -> (i32, i32) {
    %c0_i32 = arith.constant 0 : i32
    return %arg0, %arg1 : i32, i32
  }
}

</mosaic_0001>

<llo_original>
// kernel: tpu_custom_call.1
$region0: #{tpu_custom_call.1}
  #allocation0 [shape = 'u32[]', space=smem, size = 0x4, offset = 0x4, fixed_abs, tag = 'smem constant byte address 0x4 - core index']
  #allocation1 [shape = 'u32[144,128]{1,0:T(1,128)}', space=vmem, size = 0x12000, scoped, tag = 'internal scratch']
  #allocation2 [shape = 'f32[16,96]{1,0:T(8,128)}', space=vmem, size = 0x2000, scoped, tag = 'scratch operand']
  %s0 = inlined_call_operand.hbm [shape: bf16[16,32], index: 0, kind: input, shape index: {}]
  %s1 = inlined_call_operand.hbm [shape: bf16[32,96], index: 1, kind: input, shape index: {}]
  %s2 = inlined_call_operand.vmem [shape: f32[1,96], index: 2, kind: input, shape index: {}]
  %s3 = inlined_call_operand.hbm [shape: bf16[16,96], index: 3, kind: output, shape index: {}]
  %s4 = sld [smem:[#allocation0]]
  $region38: #{tpu_custom_call.1} parent=0
    _
  %s6 = ssub.s32 1, %s4
  %s7 = scalar_select 0, %s6, %s4
  $region1: #{tpu_custom_call.1} parent=0
    #allocation3 [shape = 'u8[4096]{0}', space=vmem, size = 0x1000, scoped, tag = 'input window, operand 0, single buffered']
    #allocation4 [shape = 's32[1]{0}', space=sflag, size = 0x4, scoped, tag = 'scoped memory for tpu_custom_call.1']
    #allocation5 [shape = 's32[1]{0}', space=sflag, size = 0x4, scoped, tag = 'scoped memory for tpu_custom_call.1']
    #allocation6 [shape = 'u8[8192]{0}', space=vmem, size = 0x2000, scoped, tag = 'input window, operand 1, single buffered']
    #allocation7 [shape = 's32[1]{0}', space=sflag, size = 0x4, scoped, tag = 'scoped memory for tpu_custom_call.1']
    #allocation8 [shape = 'u8[4096]{0}', space=vmem, size = 0x1000, scoped, tag = 'output window, operand 0, single buffered']
    %8 = vsyncpa [#allocation4], 0
    %9 = vsyncpa [#allocation7], 0
    %10 = vsyncpa [#allocation5], 0
    // Predicated region
    $region2: #{tpu_custom_call.1} parent=1 // pred_check
      _
    $region3: #{tpu_custom_call.1} parent=1 // pred_check_branch
      %12 = sbr.rel (0) target = $region5
    $region4: #{tpu_custom_call.1} parent=1 // pred_region
      %s14 = ssub.s32 128, 128
      %15 = vsyncadd [#allocation4], %s14
      %s16 = sshll.u32 [#allocation3], 4
      %s17 = int_to_ptr.vmem [resolvable:$true] %s16
      %22 = dma.hbm_to_vmem [thread:$0]  %s0, 128, %s17, [#allocation4], 64, 64, 4
    $region5: #{tpu_custom_call.1} parent=1 // pred_fallthru
      _
    // Predicated region
    $region6: #{tpu_custom_call.1} parent=1 // pred_check
      _
    $region7: #{tpu_custom_call.1} parent=1 // pred_check_branch
      %24 = sbr.rel (0) target = $region9
    $region8: #{tpu_custom_call.1} parent=1 // pred_region
      %s26 = ssub.s32 256, 256
      %27 = vsyncadd [#allocation7], %s26
      %s28 = sshll.u32 [#allocation6], 4
      %s29 = int_to_ptr.vmem [resolvable:$true] %s28
      %34 = dma.hbm_to_vmem [thread:$0]  %s1, 256, %s29, [#allocation7], 64, 64, 4
    $region9: #{tpu_custom_call.1} parent=1 // pred_fallthru
      _
    // Predicated region
    $region10: #{tpu_custom_call.1} parent=1 // pred_check
      _
    $region11: #{tpu_custom_call.1} parent=1 // pred_check_branch
      %36 = sbr.rel (0) target = $region13
    $region12: #{tpu_custom_call.1} parent=1 // pred_region
      _
    $region13: #{tpu_custom_call.1} parent=1 // pred_fallthru
      _
    // Predicated region
    $region14: #{tpu_custom_call.1} parent=1 // pred_check
      _
    $region15: #{tpu_custom_call.1} parent=1 // pred_check_branch
      %38 = sbr.rel (0) target = $region17
    $region16: #{tpu_custom_call.1} parent=1 // pred_region
      %39 = dma.done [#allocation4], 128
    $region17: #{tpu_custom_call.1} parent=1 // pred_fallthru
      _
    // Predicated region
    $region18: #{tpu_custom_call.1} parent=1 // pred_check
      _
    $region19: #{tpu_custom_call.1} parent=1 // pred_check_branch
      %41 = sbr.rel (0) target = $region21
    $region20: #{tpu_custom_call.1} parent=1 // pred_region
      %42 = dma.done [#allocation7], 256
    $region21: #{tpu_custom_call.1} parent=1 // pred_fallthru
      _
    %p44 = scmp.eq.s32.totalorder 0, 0
    // Predicated region
    $region22: #{tpu_custom_call.1} parent=1 // pred_check
      %p45 = pneg %p44
    $region23: #{tpu_custom_call.1} parent=1 // pred_check_branch
      %47 = sbr.rel (%p45) target = $region25
    $region24: #{tpu_custom_call.1} parent=1 // pred_region
      %vm48 = vcmask 785408
      %49 = vst.msk [vmem:[#allocation2] sm:$0xff] %vm48, 0.0
      %50 = vst.msk [vmem:[#allocation2 + $0x8] sm:$0xff] %vm48, 0.0
    $region25: #{tpu_custom_call.1} parent=1 // pred_fallthru
      _
    %v51 = vld [vmem:[#allocation2] sm:$0xff]
    %v52 = vld [vmem:[#allocation2 + $0x8] sm:$0xff]
    %v53 = vld [vmem:[#allocation3] sm:$0xf]
    %v54 = vld [vmem:[#allocation3 + $0x4] sm:$0xf]
    %v55 = vld [vmem:[#allocation6] sm:$0xf]
    %v56 = vld [vmem:[#allocation6 + $0x4] sm:$0xf]
    %v57 = vld [vmem:[#allocation6 + $0x8] sm:$0xf]
    %v58 = vld [vmem:[#allocation6 + $0xc] sm:$0xf]
    %v61 = vunpack.c.l.b16 %v53
    %v62 = vunpack.c.l.b16 %v54
    %v63 = vpack.c.b16 %v62, %v61
    %v68 = vunpack.c.l.b16 %v55
    %v69 = vunpack.c.l.b16 %v56
    %v70 = vunpack.c.l.b16 %v57
    %v71 = vunpack.c.l.b16 %v58
    %v72 = vpack.c.b16 %v69, %v68
    %v73 = vpack.c.b16 %v71, %v70
    %vm76 = vcmask 261120
    %v78 = vsel %vm76, %v63, 0
    %80 = vmatprep.subr.bf16.mxu0 0
    %81 = vmatpush1.bf16.msra.mxu0 %v72
    %82 = vmatprep.subr.bf16.mxu0 0
    %83 = vmatpush1.bf16.msra.mxu0 %v73
    %84 = vmatprep.subr.bf16.mxu0 0
    %85 = vmatpush1.bf16.msra.mxu0 0
    %86 = vmatprep.subr.bf16.mxu0 0
    %87 = vmatpush1.bf16.msra.mxu0 0
    %88 = vmatprep.subr.bf16.mxu0 0
    %89 = vmatpush1.bf16.msra.mxu0 0
    %90 = vmatprep.subr.bf16.mxu0 0
    %91 = vmatpush1.bf16.msra.mxu0 0
    %92 = vmatprep.subr.bf16.mxu0 0
    %93 = vmatpush1.bf16.msra.mxu0 0
    %94 = vmatprep.subr.bf16.mxu0 0
    %95 = vmatpush1.bf16.msra.mxu0 0
    %96 = vmatprep.subr.bf16.mxu0 0
    %97 = vmatpush1.bf16.msra.mxu0 0
    %98 = vmatprep.subr.bf16.mxu0 0
    %99 = vmatpush1.bf16.msra.mxu0 0
    %100 = vmatprep.subr.bf16.mxu0 0
    %101 = vmatpush1.bf16.msra.mxu0 0
    %102 = vmatprep.subr.bf16.mxu0 0
    %103 = vmatpush1.bf16.msra.mxu0 0
    %104 = vmatprep.subr.bf16.mxu0 0
    %105 = vmatpush1.bf16.msra.mxu0 0
    %106 = vmatprep.subr.bf16.mxu0 0
    %107 = vmatpush1.bf16.msra.mxu0 0
    %108 = vmatprep.subr.bf16.mxu0 0
    %109 = vmatpush1.bf16.msra.mxu0 0
    %110 = vmatprep.subr.bf16.mxu0 0
    %111 = vmatpush1.bf16.msra.mxu0 0
    %112 = vmatprep.mubr.bf16.mxu0 0
    %113 = vmatmul.mubr.bf16.gmra.mrb[0].mxu0 %v78
    %v114 = vpop.f32.mrb[0].mxu0
    %v115 = vadd.f32 0.0, %v114
    %v116 = vpop.f32.mrb[0].mxu0
    %v117 = vpop.f32.mrb[0].mxu0
    %v118 = vadd.f32 0.0, %v117
    %v119 = vpop.f32.mrb[0].mxu0
    %120 = vdwg.mxu0
    %v121 = vadd.f32 %v51, %v115
    %v122 = vadd.f32 %v52, %v118
    %vm123 = vcmask 785408
    %124 = vst.msk [vmem:[#allocation2] sm:$0xff] %vm123, %v121
    %125 = vst.msk [vmem:[#allocation2 + $0x8] sm:$0xff] %vm123, %v122
    // Predicated region
    $region26: #{tpu_custom_call.1} parent=1 // pred_check
      %p126 = pneg %p44
    $region27: #{tpu_custom_call.1} parent=1 // pred_check_branch
      %128 = sbr.rel (%p126) target = $region29
    $region28: #{tpu_custom_call.1} parent=1 // pred_region
      %v129 = vld [vmem:[#allocation2] sm:$0xff]
      %v130 = vld [vmem:[#allocation2 + $0x8] sm:$0xff]
      %v131 = vld [vmem:[%s2] sm:$0x1]
      %v133 = vlaneseq
      %v134 = vshrl.u32 %v133, 7
      %v135 = vsub.s32 0, %v134
      %v136 = vrot.slane %v131, %v135
      %v138 = vadd.f32 %v129, %v136
      %v139 = vadd.f32 %v130, %v136
      %v140 = vpack.c.bf16 %v139, %v138
      %v142 = vunpack.c.l.b16 %v140
      %v143 = vunpack.c.h.b16 %v140
      %v144 = vpack.c.b16 %v142, %v142
      %v145 = vpack.c.b16 %v143, %v143
      %vm148 = vcmask 781312
      %149 = vst.msk [vmem:[#allocation8] sm:$0xf] %vm148, %v144
      %150 = vst.msk [vmem:[#allocation8 + $0x4] sm:$0xf] %vm148, %v145
    $region29: #{tpu_custom_call.1} parent=1 // pred_fallthru
      _
    // Predicated region
    $region30: #{tpu_custom_call.1} parent=1 // pred_check
      _
    $region31: #{tpu_custom_call.1} parent=1 // pred_check_branch
      %152 = sbr.rel (0) target = $region33
    $region32: #{tpu_custom_call.1} parent=1 // pred_region
      %s154 = ssub.s32 128, 128
      %155 = vsyncadd [#allocation5], %s154
      %s156 = sshll.u32 [#allocation8], 4
      %s157 = int_to_ptr.vmem [resolvable:$true] %s156
      %162 = dma.vmem_to_hbm [thread:$0]  %s157, 128, %s3, [#allocation5], 64, 64, 4
    $region33: #{tpu_custom_call.1} parent=1 // pred_fallthru
      _
    // Predicated region
    $region34: #{tpu_custom_call.1} parent=1 // pred_check
      _
    $region35: #{tpu_custom_call.1} parent=1 // pred_check_branch
      %164 = sbr.rel (0) target = $region37
    $region36: #{tpu_custom_call.1} parent=1 // pred_region
      %165 = dma.done [#allocation5], 128
    $region37: #{tpu_custom_call.1} parent=1 // pred_fallthru
      _
    %166 = vsyncpa [#allocation4], 1
    %167 = vsyncpa [#allocation7], 1
    %168 = vsyncpa [#allocation5], 1

</llo_original>
